<compile_context>
chip_gen: v6e
topology: v6e:2x2x1
jax: 0.10.0
libtpu: 0.0.40
codegen_flags: <defaults>
</compile_context>

<pallas_src>
import functools

import jax
import jax.numpy as jnp
from jax import lax
from jax.experimental import pallas as pl
from jax.experimental.pallas import tpu as pltpu


def mlp_kernel(x_ref, w1_ref, b1_ref, w2_ref, b2_ref, w3_ref, b3_ref, o_ref):
    x = x_ref[...]                                               # (TB, in) f32
    # fc1 + ReLU: contract the `in` dim of both operands -> (32, TB).
    h1 = lax.dot_general(w1_ref[...], x, (((1,), (1,)), ((), ())),
                         preferred_element_type=jnp.float32)
    h1 = jnp.maximum(h1 + b1_ref[...], 0.0)
    # fc2 + ReLU: (4, 32) @ (32, TB) -> (4, TB).
    h2 = jnp.dot(w2_ref[...], h1, preferred_element_type=jnp.float32)
    h2 = jnp.maximum(h2 + b2_ref[...], 0.0)
    # fc3: (1, 4) @ (4, TB) -> (1, TB); lane-dense, unmasked store.
    y = jnp.dot(w3_ref[...], h2, preferred_element_type=jnp.float32)
    o_ref[...] = (y + b3_ref[...]).astype(o_ref.dtype)


@functools.partial(jax.jit, static_argnames=("tb",))
def neural_network_forward(x, params, *, tb=2048):
    """x: (B, input_size) f32 -> (B, 1) f32. Params in PyTorch (out, in) layout."""
    w1, b1, w2, b2, w3, b3 = params
    B, in_size = x.shape

    if B <= tb:
        TB, Bp = B, B              # single whole-array block: no (8,128) tiling rule
    else:
        TB = tb                    # must be a multiple of 128
        Bp = pl.cdiv(B, TB) * TB

    xp = x if Bp == B else jnp.pad(x, ((0, Bp - B), (0, 0)))

    resident = lambda a: pl.BlockSpec(a.shape, lambda i: (0, 0))

    out = pl.pallas_call(
        mlp_kernel,
        out_shape=jax.ShapeDtypeStruct((1, Bp), jnp.float32),
        grid=(Bp // TB,),
        in_specs=[
            pl.BlockSpec((TB, in_size), lambda i: (i, 0)),      # x tile, pipelined
            resident(w1), resident(b1),
            resident(w2), resident(b2),
            resident(w3), resident(b3),
        ],
        out_specs=pl.BlockSpec((1, TB), lambda i: (0, i)),      # lane-dense output
        compiler_params=pltpu.CompilerParams(
            dimension_semantics=("parallel",),                  # v7x: 2 TensorCores
        ),
    )(xp, w1, b1, w2, b2, w3, b3)

    return out[:, :B].T                                         # (B, 1)


def init_params(key, input_size):
    """Deterministic init mimicking PyTorch Linear's U(-1/sqrt(fan_in), +...)."""
    ks = jax.random.split(key, 6)

    def uniform(k, shape, fan_in):
        bound = 1.0 / jnp.sqrt(jnp.float32(fan_in))
        return jax.random.uniform(k, shape, jnp.float32, -bound, bound)

    # PyTorch nn.Linear layout: weight (out, in); bias as (out, 1) columns so it
    # broadcasts across the lane (batch) axis inside the kernel.
    w1 = uniform(ks[0], (32, input_size), input_size)
    b1 = uniform(ks[1], (32, 1), input_size)
    w2 = uniform(ks[2], (4, 32), 32)
    b2 = uniform(ks[3], (4, 1), 32)
    w3 = uniform(ks[4], (1, 4), 4)
    b3 = uniform(ks[5], (1, 1), 4)
    return (w1, b1, w2, b2, w3, b3)


def reference_forward(x, params):
    w1, b1, w2, b2, w3, b3 = params
    h1 = jnp.maximum(x @ w1.T + b1.T, 0.0)
    h2 = jnp.maximum(h1 @ w2.T + b2.T, 0.0)
    return h2 @ w3.T + b3.T


if __name__ == "__main__":
    key = jax.random.PRNGKey(0)
    k_x, k_p, k_x2 = jax.random.split(key, 3)

    input_size = 16
    params = init_params(k_p, input_size)

    # Small case (single whole-array block, matches the original module scale).
    x_small = jax.random.normal(k_x, (8, input_size), jnp.float32)
    out_small = jax.block_until_ready(neural_network_forward(x_small, params))
    ref_small = reference_forward(x_small, params)
    assert out_small.shape == (8, 1)
    assert jnp.allclose(out_small, ref_small, atol=2e-2, rtol=2e-2), (
        float(jnp.max(jnp.abs(out_small - ref_small))))

    # Larger case exercising the tiled / pipelined batch grid (TB=128, grid=(4,)).
    x_big = jax.random.normal(k_x2, (512, input_size), jnp.float32)
    out_big = jax.block_until_ready(neural_network_forward(x_big, params, tb=128))
    ref_big = reference_forward(x_big, params)
    assert out_big.shape == (512, 1)
    assert jnp.allclose(out_big, ref_big, atol=2e-2, rtol=2e-2), (
        float(jnp.max(jnp.abs(out_big - ref_big))))

    print("KERNEL_OK")
</pallas_src>

<mosaic_0001>
module attributes {stable_mosaic.version = 11 : i64} {
  func.func @mlp_kernel(%arg0: i32, %arg1: memref<8x16xf32, #tpu.memory_space<vmem>>, %arg2: memref<32x16xf32, #tpu.memory_space<vmem>>, %arg3: memref<32x1xf32, #tpu.memory_space<vmem>>, %arg4: memref<4x32xf32, #tpu.memory_space<vmem>>, %arg5: memref<4x1xf32, #tpu.memory_space<vmem>>, %arg6: memref<1x4xf32, #tpu.memory_space<vmem>>, %arg7: memref<1x1xf32, #tpu.memory_space<vmem>>, %arg8: memref<1x8xf32, #tpu.memory_space<vmem>>) attributes {dimension_semantics = [#tpu.dimension_semantics<parallel>], iteration_bounds = array<i64: 1>, scalar_prefetch = 0 : i64, scratch_operands = 0 : i64, tpu.core_type = #tpu.core_type<tc>, window_params = [{transform_indices = @transform_0, window_bounds = array<i64: 8, 16>}, {pipeline_mode = #tpu.pipeline_mode<synchronous>, transform_indices = @transform_1, window_bounds = array<i64: 32, 16>}, {pipeline_mode = #tpu.pipeline_mode<synchronous>, transform_indices = @transform_2, window_bounds = array<i64: 32, 1>}, {pipeline_mode = #tpu.pipeline_mode<synchronous>, transform_indices = @transform_3, window_bounds = array<i64: 4, 32>}, {pipeline_mode = #tpu.pipeline_mode<synchronous>, transform_indices = @transform_4, window_bounds = array<i64: 4, 1>}, {pipeline_mode = #tpu.pipeline_mode<synchronous>, transform_indices = @transform_5, window_bounds = array<i64: 1, 4>}, {pipeline_mode = #tpu.pipeline_mode<synchronous>, transform_indices = @transform_6, window_bounds = array<i64: 1, 1>}, {transform_indices = @transform_7, window_bounds = array<i64: 1, 8>}]} {
    %c0 = arith.constant 0 : index
    %c0_0 = arith.constant 0 : index
    %0 = vector.load %arg1[%c0, %c0_0] : memref<8x16xf32, #tpu.memory_space<vmem>>, vector<8x16xf32>
    %c0_1 = arith.constant 0 : index
    %c0_2 = arith.constant 0 : index
    %1 = vector.load %arg2[%c0_1, %c0_2] : memref<32x16xf32, #tpu.memory_space<vmem>>, vector<32x16xf32>
    %cst = arith.constant dense<0.000000e+00> : vector<32x8xf32>
    %2 = tpu.matmul %1, %0, %cst {dimension_numbers = #tpu.dot_dimension_numbers<[1], [1], [0], [0], [0, 0, 1, 0], [], []>} : vector<32x16xf32>, vector<8x16xf32>, vector<32x8xf32> -> vector<32x8xf32>
    %c0_3 = arith.constant 0 : index
    %c0_4 = arith.constant 0 : index
    %3 = vector.load %arg3[%c0_3, %c0_4] : memref<32x1xf32, #tpu.memory_space<vmem>>, vector<32x1xf32>
    %4 = vector.broadcast %3 : vector<32x1xf32> to vector<32x8xf32>
    %5 = arith.addf %2, %4 : vector<32x8xf32>
    %cst_5 = arith.constant 0.000000e+00 : f32
    %6 = vector.broadcast %cst_5 : f32 to vector<32x8xf32>
    %7 = arith.maximumf %5, %6 : vector<32x8xf32>
    %c0_6 = arith.constant 0 : index
    %c0_7 = arith.constant 0 : index
    %8 = vector.load %arg4[%c0_6, %c0_7] : memref<4x32xf32, #tpu.memory_space<vmem>>, vector<4x32xf32>
    %cst_8 = arith.constant dense<0.000000e+00> : vector<4x8xf32>
    %9 = tpu.matmul %8, %7, %cst_8 {dimension_numbers = #tpu.dot_dimension_numbers<[1], [0], [0], [1], [0, 0, 1, 1], [], []>} : vector<4x32xf32>, vector<32x8xf32>, vector<4x8xf32> -> vector<4x8xf32>
    %c0_9 = arith.constant 0 : index
    %c0_10 = arith.constant 0 : index
    %10 = vector.load %arg5[%c0_9, %c0_10] : memref<4x1xf32, #tpu.memory_space<vmem>>, vector<4x1xf32>
    %11 = vector.broadcast %10 : vector<4x1xf32> to vector<4x8xf32>
    %12 = arith.addf %9, %11 : vector<4x8xf32>
    %cst_11 = arith.constant 0.000000e+00 : f32
    %13 = vector.broadcast %cst_11 : f32 to vector<4x8xf32>
    %14 = arith.maximumf %12, %13 : vector<4x8xf32>
    %c0_12 = arith.constant 0 : index
    %c0_13 = arith.constant 0 : index
    %15 = vector.load %arg6[%c0_12, %c0_13] : memref<1x4xf32, #tpu.memory_space<vmem>>, vector<1x4xf32>
    %cst_14 = arith.constant dense<0.000000e+00> : vector<1x8xf32>
    %16 = tpu.matmul %15, %14, %cst_14 {dimension_numbers = #tpu.dot_dimension_numbers<[1], [0], [0], [1], [0, 0, 1, 1], [], []>} : vector<1x4xf32>, vector<4x8xf32>, vector<1x8xf32> -> vector<1x8xf32>
    %c0_15 = arith.constant 0 : index
    %c0_16 = arith.constant 0 : index
    %17 = vector.load %arg7[%c0_15, %c0_16] : memref<1x1xf32, #tpu.memory_space<vmem>>, vector<1x1xf32>
    %18 = vector.broadcast %17 : vector<1x1xf32> to vector<1x8xf32>
    %19 = arith.addf %16, %18 : vector<1x8xf32>
    %c0_17 = arith.constant 0 : index
    %c0_18 = arith.constant 0 : index
    %20 = vector.load %arg8[%c0_17, %c0_18] : memref<1x8xf32, #tpu.memory_space<vmem>>, vector<1x8xf32>
    tpu.vector_store %arg8[%c0_17, %c0_18], %19 {strides = array<i32>} : memref<1x8xf32, #tpu.memory_space<vmem>>, vector<1x8xf32>,
    return
  }
  func.func @transform_0(%arg0: i32) -> (i32, i32) {
    %c0_i32 = arith.constant 0 : i32
    %c0_i32_0 = arith.constant 0 : i32
    return %arg0, %c0_i32 : i32, i32
  }
  func.func @transform_1(%arg0: i32) -> (i32, i32) {
    %c0_i32 = arith.constant 0 : i32
    %c0_i32_0 = arith.constant 0 : i32
    %c0_i32_1 = arith.constant 0 : i32
    return %c0_i32, %c0_i32_0 : i32, i32
  }
  func.func @transform_2(%arg0: i32) -> (i32, i32) {
    %c0_i32 = arith.constant 0 : i32
    %c0_i32_0 = arith.constant 0 : i32
    %c0_i32_1 = arith.constant 0 : i32
    return %c0_i32, %c0_i32_0 : i32, i32
  }
  func.func @transform_3(%arg0: i32) -> (i32, i32) {
    %c0_i32 = arith.constant 0 : i32
    %c0_i32_0 = arith.constant 0 : i32
    %c0_i32_1 = arith.constant 0 : i32
    return %c0_i32, %c0_i32_0 : i32, i32
  }
  func.func @transform_4(%arg0: i32) -> (i32, i32) {
    %c0_i32 = arith.constant 0 : i32
    %c0_i32_0 = arith.constant 0 : i32
    %c0_i32_1 = arith.constant 0 : i32
    return %c0_i32, %c0_i32_0 : i32, i32
  }
  func.func @transform_5(%arg0: i32) -> (i32, i32) {
    %c0_i32 = arith.constant 0 : i32
    %c0_i32_0 = arith.constant 0 : i32
    %c0_i32_1 = arith.constant 0 : i32
    return %c0_i32, %c0_i32_0 : i32, i32
  }
  func.func @transform_6(%arg0: i32) -> (i32, i32) {
    %c0_i32 = arith.constant 0 : i32
    %c0_i32_0 = arith.constant 0 : i32
    %c0_i32_1 = arith.constant 0 : i32
    return %c0_i32, %c0_i32_0 : i32, i32
  }
  func.func @transform_7(%arg0: i32) -> (i32, i32) {
    %c0_i32 = arith.constant 0 : i32
    %c0_i32_0 = arith.constant 0 : i32
    return %c0_i32, %arg0 : i32, i32
  }
}

</mosaic_0001>

<llo_original>
// kernel: neural_network_forward.1
$region0: #{neural_network_forward.1}
  #allocation0 [shape = 'u32[]', space=smem, size = 0x4, offset = 0x4, fixed_abs, tag = 'smem constant byte address 0x4 - core index']
  #allocation1 [shape = 'u32[144,128]{1,0:T(1,128)}', space=vmem, size = 0x12000, scoped, tag = 'internal scratch']
  #allocation2 [shape = 'f32[1,1]{1,0:T(1,128)S(1)}', space=vmem, size = 0x200, scoped, tag = 'scoped memory for neural_network_forward.1']
  %s0 = inlined_call_operand.vmem [shape: f32[8,16], index: 0, kind: input, shape index: {}]
  %s1 = inlined_call_operand.vmem [shape: f32[32,16], index: 1, kind: input, shape index: {}]
  %s2 = inlined_call_operand.vmem [shape: f32[32,1], index: 2, kind: input, shape index: {}]
  %s3 = inlined_call_operand.vmem [shape: f32[4,32], index: 3, kind: input, shape index: {}]
  %s4 = inlined_call_operand.vmem [shape: f32[4,1], index: 4, kind: input, shape index: {}]
  %s5 = inlined_call_operand.vmem [shape: f32[1,4], index: 5, kind: input, shape index: {}]
  %s6 = inlined_call_operand.<no memory space> [shape: f32[1,1], index: 6, kind: input, shape index: {}]
  %s7 = inlined_call_operand.hbm [shape: f32[1,8], index: 7, kind: output, shape index: {}]
  %s8 = sld [smem:[#allocation0]]
  $region38: #{neural_network_forward.1} parent=0
    _
  %s10 = ssub.s32 1, %s8
  %s11 = scalar_select 0, %s10, %s8
  %v12 = vstv %s6
  %13 = vst [vmem:[#allocation2] sm:$0x1] %v12
  $region1: #{neural_network_forward.1} parent=0
    #allocation3 [shape = 'u8[512]{0}', space=vmem, size = 0x400, scoped, tag = 'output window, operand 0, single buffered']
    #allocation4 [shape = 's32[1]{0}', space=sflag, size = 0x4, scoped, tag = 'scoped memory for neural_network_forward.1']
    %14 = vsyncpa [#allocation4], 0
    // Predicated region
    $region2: #{neural_network_forward.1} parent=1 // pred_check
      _
    $region3: #{neural_network_forward.1} parent=1 // pred_check_branch
      %16 = sbr.rel (0) target = $region5
    $region4: #{neural_network_forward.1} parent=1 // pred_region
      _
    $region5: #{neural_network_forward.1} parent=1 // pred_fallthru
      _
    // Predicated region
    $region6: #{neural_network_forward.1} parent=1 // pred_check
      _
    $region7: #{neural_network_forward.1} parent=1 // pred_check_branch
      %18 = sbr.rel (0) target = $region9
    $region8: #{neural_network_forward.1} parent=1 // pred_region
      _
    $region9: #{neural_network_forward.1} parent=1 // pred_fallthru
      _
    // Predicated region
    $region10: #{neural_network_forward.1} parent=1 // pred_check
      _
    $region11: #{neural_network_forward.1} parent=1 // pred_check_branch
      %20 = sbr.rel (0) target = $region13
    $region12: #{neural_network_forward.1} parent=1 // pred_region
      _
    $region13: #{neural_network_forward.1} parent=1 // pred_fallthru
      _
    // Predicated region
    $region14: #{neural_network_forward.1} parent=1 // pred_check
      _
    $region15: #{neural_network_forward.1} parent=1 // pred_check_branch
      %22 = sbr.rel (0) target = $region17
    $region16: #{neural_network_forward.1} parent=1 // pred_region
      _
    $region17: #{neural_network_forward.1} parent=1 // pred_fallthru
      _
    // Predicated region
    $region18: #{neural_network_forward.1} parent=1 // pred_check
      _
    $region19: #{neural_network_forward.1} parent=1 // pred_check_branch
      %24 = sbr.rel (0) target = $region21
    $region20: #{neural_network_forward.1} parent=1 // pred_region
      _
    $region21: #{neural_network_forward.1} parent=1 // pred_fallthru
      _
    // Predicated region
    $region22: #{neural_network_forward.1} parent=1 // pred_check
      _
    $region23: #{neural_network_forward.1} parent=1 // pred_check_branch
      %26 = sbr.rel (0) target = $region25
    $region24: #{neural_network_forward.1} parent=1 // pred_region
      _
    $region25: #{neural_network_forward.1} parent=1 // pred_fallthru
      _
    // Predicated region
    $region26: #{neural_network_forward.1} parent=1 // pred_check
      _
    $region27: #{neural_network_forward.1} parent=1 // pred_check_branch
      %28 = sbr.rel (0) target = $region29
    $region28: #{neural_network_forward.1} parent=1 // pred_region
      _
    $region29: #{neural_network_forward.1} parent=1 // pred_fallthru
      _
    %v29 = vld [vmem:[%s0] sm:$0xff]
    %v30 = vld [vmem:[%s1] sm:$0xff]
    %v31 = vld [vmem:[%s1 + $0x8] sm:$0xff]
    %v32 = vld [vmem:[%s1 + $0x10] sm:$0xff]
    %v33 = vld [vmem:[%s1 + $0x18] sm:$0xff]
    %v34 = vld [vmem:[%s2] sm:$0xff]
    %v35 = vld [vmem:[%s2 + $0x8] sm:$0xff]
    %v36 = vld [vmem:[%s2 + $0x10] sm:$0xff]
    %v37 = vld [vmem:[%s2 + $0x18] sm:$0xff]
    %39 = vset.pattern.permute.xlu0 0
    %40 = vperm.xlu0 %39, %v34
    %v41 = vpop.permute.xlu0 %40
    %44 = vset.pattern.permute.xlu0 0
    %45 = vperm.xlu0 %44, %v35
    %v46 = vpop.permute.xlu0 %45
    %49 = vset.pattern.permute.xlu0 0
    %50 = vperm.xlu0 %49, %v36
    %v51 = vpop.permute.xlu0 %50
    %54 = vset.pattern.permute.xlu0 0
    %55 = vperm.xlu0 %54, %v37
    %v56 = vpop.permute.xlu0 %55
    %vm58 = vcmask 130048
    %v60 = vsel %vm58, %v30, 0
    %v63 = vsel %vm58, %v31, 0
    %v66 = vsel %vm58, %v32, 0
    %v69 = vsel %vm58, %v33, 0
    %v72 = vsel %vm58, %v29, 0
    %74 = vmatprep.subr.mxu0 0.0
    %75 = vmatpush1.xpose.msra.mxu0 0.0
    %76 = vmatprep.subr.mxu0 0.0
    %77 = vmatpush1.xpose.msra.mxu0 0.0
    %78 = vmatprep.subr.mxu0 0.0
    %79 = vmatpush1.xpose.msra.mxu0 0.0
    %80 = vmatprep.subr.mxu0 0.0
    %81 = vmatpush1.xpose.msra.mxu0 0.0
    %82 = vmatprep.subr.mxu0 0.0
    %83 = vmatpush1.xpose.msra.mxu0 0.0
    %84 = vmatprep.subr.mxu0 0.0
    %85 = vmatpush1.xpose.msra.mxu0 0.0
    %86 = vmatprep.subr.mxu0 0.0
    %87 = vmatpush1.xpose.msra.mxu0 0.0
    %88 = vmatprep.subr.mxu0 0.0
    %89 = vmatpush1.xpose.msra.mxu0 0.0
    %90 = vmatprep.subr.mxu0 0.0
    %91 = vmatpush1.xpose.msra.mxu0 0.0
    %92 = vmatprep.subr.mxu0 0.0
    %93 = vmatpush1.xpose.msra.mxu0 0.0
    %94 = vmatprep.subr.mxu0 0.0
    %95 = vmatpush1.xpose.msra.mxu0 0.0
    %96 = vmatprep.subr.mxu0 0.0
    %97 = vmatpush1.xpose.msra.mxu0 0.0
    %98 = vmatprep.subr.mxu0 0.0
    %99 = vmatpush1.xpose.msra.mxu0 0.0
    %100 = vmatprep.subr.mxu0 0.0
    %101 = vmatpush1.xpose.msra.mxu0 0.0
    %102 = vmatprep.subr.mxu0 0.0
    %103 = vmatpush1.xpose.msra.mxu0 0.0
    %104 = vmatprep.subr.mxu0 0.0
    %105 = vmatpush1.xpose.msra.mxu0 %v72
    %106 = vmatprep.subr.mxu0 0.0
    %107 = vmatpush2.xpose.msra.mxu0 0.0
    %108 = vmatprep.subr.mxu0 0.0
    %109 = vmatpush2.xpose.msra.mxu0 0.0
    %110 = vmatprep.subr.mxu0 0.0
    %111 = vmatpush2.xpose.msra.mxu0 0.0
    %112 = vmatprep.subr.mxu0 0.0
    %113 = vmatpush2.xpose.msra.mxu0 0.0
    %114 = vmatprep.subr.mxu0 0.0
    %115 = vmatpush2.xpose.msra.mxu0 0.0
    %116 = vmatprep.subr.mxu0 0.0
    %117 = vmatpush2.xpose.msra.mxu0 0.0
    %118 = vmatprep.subr.mxu0 0.0
    %119 = vmatpush2.xpose.msra.mxu0 0.0
    %120 = vmatprep.subr.mxu0 0.0
    %121 = vmatpush2.xpose.msra.mxu0 0.0
    %122 = vmatprep.subr.mxu0 0.0
    %123 = vmatpush2.xpose.msra.mxu0 0.0
    %124 = vmatprep.subr.mxu0 0.0
    %125 = vmatpush2.xpose.msra.mxu0 0.0
    %126 = vmatprep.subr.mxu0 0.0
    %127 = vmatpush2.xpose.msra.mxu0 0.0
    %128 = vmatprep.subr.mxu0 0.0
    %129 = vmatpush2.xpose.msra.mxu0 0.0
    %130 = vmatprep.subr.mxu0 0.0
    %131 = vmatpush2.xpose.msra.mxu0 0.0
    %132 = vmatprep.subr.mxu0 0.0
    %133 = vmatpush2.xpose.msra.mxu0 0.0
    %134 = vmatprep.subr.mxu0 0.0
    %135 = vmatpush2.xpose.msra.mxu0 0.0
    %136 = vmatprep.subr.mxu0 0.0
    %137 = vmatpush2.xpose.msra.mxu0 0.0
    %138 = vmatprep.mubr.f32.mxu0 0.0
    %139 = vmatmul.mubr.f32.gmra.mxu0 %v60
    %v140 = vpop.f32.mrf.mxu0
    %v141 = vadd.f32 %v41, %v140
    %v142 = vpop.f32.mrf.mxu0
    %143 = vmatprep.mubr.f32.mxu0 0.0
    %144 = vmatmul.mubr.f32.gmra.mxu0 %v63
    %v145 = vpop.f32.mrf.mxu0
    %v146 = vadd.f32 %v46, %v145
    %v147 = vpop.f32.mrf.mxu0
    %148 = vmatprep.mubr.f32.mxu0 0.0
    %149 = vmatmul.mubr.f32.gmra.mxu0 %v66
    %v150 = vpop.f32.mrf.mxu0
    %v151 = vadd.f32 %v51, %v150
    %v152 = vpop.f32.mrf.mxu0
    %153 = vmatprep.mubr.f32.mxu0 0.0
    %154 = vmatmul.mubr.f32.gmra.mxu0 %v69
    %v155 = vpop.f32.mrf.mxu0
    %v156 = vadd.f32 %v56, %v155
    %v157 = vpop.f32.mrf.mxu0
    %158 = vdwg.mxu0
    %v159 = vmax.f32 %v141, 0.0
    %v160 = vmax.f32 %v146, 0.0
    %v161 = vmax.f32 %v151, 0.0
    %v162 = vmax.f32 %v156, 0.0
    %v163 = vld [vmem:[%s3] sm:$0xf]
    %v164 = vld [vmem:[%s4] sm:$0xf]
    %166 = vset.pattern.permute.xlu0 0
    %167 = vperm.xlu0 %166, %v164
    %v168 = vpop.permute.xlu0 %167
    %vm170 = vcmask 261120
    %v172 = vsel %vm170, %v163, 0
    %174 = vmatprep.subr.mxu0 0.0
    %175 = vmatpush1.msra.mxu0 0.0
    %176 = vmatprep.subr.mxu0 0.0
    %177 = vmatpush1.msra.mxu0 0.0
    %178 = vmatprep.subr.mxu0 0.0
    %179 = vmatpush1.msra.mxu0 0.0
    %180 = vmatprep.subr.mxu0 0.0
    %181 = vmatpush1.msra.mxu0 0.0
    %182 = vmatprep.subr.mxu0 0.0
    %183 = vmatpush1.msra.mxu0 0.0
    %184 = vmatprep.subr.mxu0 0.0
    %185 = vmatpush1.msra.mxu0 0.0
    %186 = vmatprep.subr.mxu0 0.0
    %187 = vmatpush1.msra.mxu0 0.0
    %188 = vmatprep.subr.mxu0 0.0
    %189 = vmatpush1.msra.mxu0 0.0
    %190 = vmatprep.subr.mxu0 0.0
    %191 = vmatpush1.msra.mxu0 0.0
    %192 = vmatprep.subr.mxu0 0.0
    %193 = vmatpush1.msra.mxu0 0.0
    %194 = vmatprep.subr.mxu0 0.0
    %195 = vmatpush1.msra.mxu0 0.0
    %196 = vmatprep.subr.mxu0 0.0
    %197 = vmatpush1.msra.mxu0 0.0
    %198 = vmatprep.subr.mxu0 0.0
    %199 = vmatpush1.msra.mxu0 %v162
    %200 = vmatprep.subr.mxu0 0.0
    %201 = vmatpush1.msra.mxu0 %v161
    %202 = vmatprep.subr.mxu0 0.0
    %203 = vmatpush1.msra.mxu0 %v160
    %204 = vmatprep.subr.mxu0 0.0
    %205 = vmatpush1.msra.mxu0 %v159
    %206 = vmatprep.subr.mxu0 0.0
    %207 = vmatpush2.msra.mxu0 0.0
    %208 = vmatprep.subr.mxu0 0.0
    %209 = vmatpush2.msra.mxu0 0.0
    %210 = vmatprep.subr.mxu0 0.0
    %211 = vmatpush2.msra.mxu0 0.0
    %212 = vmatprep.subr.mxu0 0.0
    %213 = vmatpush2.msra.mxu0 0.0
    %214 = vmatprep.subr.mxu0 0.0
    %215 = vmatpush2.msra.mxu0 0.0
    %216 = vmatprep.subr.mxu0 0.0
    %217 = vmatpush2.msra.mxu0 0.0
    %218 = vmatprep.subr.mxu0 0.0
    %219 = vmatpush2.msra.mxu0 0.0
    %220 = vmatprep.subr.mxu0 0.0
    %221 = vmatpush2.msra.mxu0 0.0
    %222 = vmatprep.subr.mxu0 0.0
    %223 = vmatpush2.msra.mxu0 0.0
    %224 = vmatprep.subr.mxu0 0.0
    %225 = vmatpush2.msra.mxu0 0.0
    %226 = vmatprep.subr.mxu0 0.0
    %227 = vmatpush2.msra.mxu0 0.0
    %228 = vmatprep.subr.mxu0 0.0
    %229 = vmatpush2.msra.mxu0 0.0
    %230 = vmatprep.subr.mxu0 0.0
    %231 = vmatpush2.msra.mxu0 0.0
    %232 = vmatprep.subr.mxu0 0.0
    %233 = vmatpush2.msra.mxu0 0.0
    %234 = vmatprep.subr.mxu0 0.0
    %235 = vmatpush2.msra.mxu0 0.0
    %236 = vmatprep.subr.mxu0 0.0
    %237 = vmatpush2.msra.mxu0 0.0
    %238 = vmatprep.mubr.f32.mxu0 0.0
    %239 = vmatmul.mubr.f32.gmra.mxu0 %v172
    %v240 = vpop.f32.mrf.mxu0
    %v241 = vadd.f32 %v168, %v240
    %v242 = vpop.f32.mrf.mxu0
    %243 = vdwg.mxu0
    %v244 = vmax.f32 %v241, 0.0
    %v245 = vld [vmem:[%s5] sm:$0x1]
    %v246 = vld [vmem:[#allocation2] sm:$0x1]
    %248 = vset.pattern.permute.xlu0 0
    %249 = vperm.xlu0 %248, %v246
    %v250 = vpop.permute.xlu0 %249
    %v252 = vlaneseq
    %v253 = vshrl.u32 %v252, 7
    %v254 = vsub.s32 0, %v253
    %v255 = vrot.slane %v250, %v254
    %vm256 = vcmask 31744
    %v258 = vsel %vm256, %v245, 0
    %vm260 = vcmask 1043456
    %v262 = vsel %vm260, %v244, 0
    %264 = vmatprep.subr.mxu0 0.0
    %265 = vmatpush1.msra.mxu0 0.0
    %266 = vmatprep.subr.mxu0 0.0
    %267 = vmatpush1.msra.mxu0 0.0
    %268 = vmatprep.subr.mxu0 0.0
    %269 = vmatpush1.msra.mxu0 0.0
    %270 = vmatprep.subr.mxu0 0.0
    %271 = vmatpush1.msra.mxu0 0.0
    %272 = vmatprep.subr.mxu0 0.0
    %273 = vmatpush1.msra.mxu0 0.0
    %274 = vmatprep.subr.mxu0 0.0
    %275 = vmatpush1.msra.mxu0 0.0
    %276 = vmatprep.subr.mxu0 0.0
    %277 = vmatpush1.msra.mxu0 0.0
    %278 = vmatprep.subr.mxu0 0.0
    %279 = vmatpush1.msra.mxu0 0.0
    %280 = vmatprep.subr.mxu0 0.0
    %281 = vmatpush1.msra.mxu0 0.0
    %282 = vmatprep.subr.mxu0 0.0
    %283 = vmatpush1.msra.mxu0 0.0
    %284 = vmatprep.subr.mxu0 0.0
    %285 = vmatpush1.msra.mxu0 0.0
    %286 = vmatprep.subr.mxu0 0.0
    %287 = vmatpush1.msra.mxu0 0.0
    %288 = vmatprep.subr.mxu0 0.0
    %289 = vmatpush1.msra.mxu0 0.0
    %290 = vmatprep.subr.mxu0 0.0
    %291 = vmatpush1.msra.mxu0 0.0
    %292 = vmatprep.subr.mxu0 0.0
    %293 = vmatpush1.msra.mxu0 0.0
    %294 = vmatprep.subr.mxu0 0.0
    %295 = vmatpush1.msra.mxu0 %v262
    %296 = vmatprep.subr.mxu0 0.0
    %297 = vmatpush2.msra.mxu0 0.0
    %298 = vmatprep.subr.mxu0 0.0
    %299 = vmatpush2.msra.mxu0 0.0
    %300 = vmatprep.subr.mxu0 0.0
    %301 = vmatpush2.msra.mxu0 0.0
    %302 = vmatprep.subr.mxu0 0.0
    %303 = vmatpush2.msra.mxu0 0.0
    %304 = vmatprep.subr.mxu0 0.0
    %305 = vmatpush2.msra.mxu0 0.0
    %306 = vmatprep.subr.mxu0 0.0
    %307 = vmatpush2.msra.mxu0 0.0
    %308 = vmatprep.subr.mxu0 0.0
    %309 = vmatpush2.msra.mxu0 0.0
    %310 = vmatprep.subr.mxu0 0.0
    %311 = vmatpush2.msra.mxu0 0.0
    %312 = vmatprep.subr.mxu0 0.0
    %313 = vmatpush2.msra.mxu0 0.0
    %314 = vmatprep.subr.mxu0 0.0
    %315 = vmatpush2.msra.mxu0 0.0
    %316 = vmatprep.subr.mxu0 0.0
    %317 = vmatpush2.msra.mxu0 0.0
    %318 = vmatprep.subr.mxu0 0.0
    %319 = vmatpush2.msra.mxu0 0.0
    %320 = vmatprep.subr.mxu0 0.0
    %321 = vmatpush2.msra.mxu0 0.0
    %322 = vmatprep.subr.mxu0 0.0
    %323 = vmatpush2.msra.mxu0 0.0
    %324 = vmatprep.subr.mxu0 0.0
    %325 = vmatpush2.msra.mxu0 0.0
    %326 = vmatprep.subr.mxu0 0.0
    %327 = vmatpush2.msra.mxu0 0.0
    %328 = vmatprep.mubr.f32.mxu0 0.0
    %329 = vmatmul.mubr.f32.gmra.mxu0 %v258
    %v330 = vpop.f32.mrf.mxu0
    %v331 = vadd.f32 %v255, %v330
    %v332 = vpop.f32.mrf.mxu0
    %333 = vdwg.mxu0
    %vm334 = vcmask 57344
    %335 = vst.msk [vmem:[#allocation3] sm:$0x1] %vm334, %v331
    // Predicated region
    $region30: #{neural_network_forward.1} parent=1 // pred_check
      _
    $region31: #{neural_network_forward.1} parent=1 // pred_check_branch
      %337 = sbr.rel (0) target = $region33
    $region32: #{neural_network_forward.1} parent=1 // pred_region
      %s339 = ssub.s32 16, 16
      %340 = vsyncadd [#allocation4], %s339
      %s342 = sshll.u32 [#allocation3], 4
      %s343 = int_to_ptr.vmem [resolvable:$true] %s342
      %345 = dma.vmem_to_hbm [thread:$0]  %s343, 16, %s7, [#allocation4]
    $region33: #{neural_network_forward.1} parent=1 // pred_fallthru
      _
    // Predicated region
    $region34: #{neural_network_forward.1} parent=1 // pred_check
      _
    $region35: #{neural_network_forward.1} parent=1 // pred_check_branch
      %347 = sbr.rel (0) target = $region37
    $region36: #{neural_network_forward.1} parent=1 // pred_region
      %348 = dma.done [#allocation4], 16
    $region37: #{neural_network_forward.1} parent=1 // pred_fallthru
      _
    %349 = vsyncpa [#allocation4], 1

</llo_original>
